<compile_context>
chip_gen: v7x
topology: tpu7x:2x2x1
jax: 0.10.0
libtpu: 0.0.40
codegen_flags: <defaults>
</compile_context>

<pallas_src>
import jax
import jax.numpy as jnp
from jax.experimental import pallas as pl
from jax.experimental.pallas import tpu as pltpu

LANE = 128           # vreg lane width (last-dim tile)
ROW_ALIGN = 32       # block-row multiple covering f32(8)/bf16(16)/int8(32) sublane minima
TARGET_BLOCK_BYTES = 2 * 1024 * 1024  # ~2 MiB per block


def _scale_kernel(scale_ref, x_ref, o_ref):
    """o = x * scale.

    scale_ref : (1,) f32 in SMEM (the learnable scalar, kept in f32)
    x_ref     : (block_rows, 128) VMEM
    o_ref     : (block_rows, 128) VMEM
    """
    o_ref[...] = (x_ref[...].astype(jnp.float32) * scale_ref[0]).astype(o_ref.dtype)


def _choose_block_rows(rows, itemsize):
    """Pick a lane-dense block height: big enough to amortize per-step overhead,
    small enough to stay well under every generation's scoped-VMEM default."""
    max_rows = max(ROW_ALIGN, TARGET_BLOCK_BYTES // (LANE * itemsize))
    if rows > max_rows:
        return max_rows
    # Whole tensor fits one block: still split into >=2 grid steps when there's
    # enough work so v7x can shard the parallel axis across both TensorCores
    # (no-op on single-TC v5e/v6e).
    if rows >= 2 * ROW_ALIGN:
        half = -(-rows // 2)
        return -(-half // ROW_ALIGN) * ROW_ALIGN
    # Tiny input: single full-extent block (block_shape == array dims is legal).
    return rows


@jax.jit
def scale_forward(x, scale):
    """Elementwise x * scale for an arbitrary-shaped x.

    x     : any shape / float dtype (e.g. (N, C, H, W) as in AWSRN)
    scale : shape-(1,) f32 array, the learnable scalar
    """
    orig_shape = x.shape
    n = x.size

    # Lane-dense 2-D view (rows, 128). Only pad the flat tail when n is not a
    # multiple of 128; otherwise the reshape is a zero-copy metadata change.
    rows = -(-n // LANE)
    padded = rows * LANE
    flat = x.reshape(-1)
    if padded != n:
        flat = jnp.pad(flat, (0, padded - n))
    x2d = flat.reshape(rows, LANE)

    block_rows = _choose_block_rows(rows, x.dtype.itemsize)
    grid = (pl.cdiv(rows, block_rows),)  # partial last block is masked by Pallas

    scale_arr = jnp.asarray(scale, jnp.float32).reshape(1)

    out2d = pl.pallas_call(
        _scale_kernel,
        out_shape=jax.ShapeDtypeStruct((rows, LANE), x.dtype),
        grid=grid,
        in_specs=[
            pl.BlockSpec(memory_space=pltpu.MemorySpace.SMEM),    # scale (f32)
            pl.BlockSpec((block_rows, LANE), lambda i: (i, 0)),   # x tile
        ],
        out_specs=pl.BlockSpec((block_rows, LANE), lambda i: (i, 0)),
        compiler_params=pltpu.CompilerParams(
            dimension_semantics=("parallel",)),
    )(scale_arr, x2d)

    out = out2d.reshape(-1)
    if padded != n:
        out = out[:n]
    return out.reshape(orig_shape)


if __name__ == "__main__":
    # Shapes consistent with where Scale is used in AWSRN: (N, C, H, W).
    N, C, H, W = 2, 4, 16, 16
    init_value = 0.001

    key = jax.random.PRNGKey(0)
    x = jax.random.normal(key, (N, C, H, W), jnp.float32)
    scale = jnp.array([init_value], jnp.float32)   # nn.Parameter([0.001])

    out = scale_forward(x, scale)
    out = jax.block_until_ready(out)

    ref = x * scale[0]
    assert out.shape == x.shape
    assert jnp.max(jnp.abs(out - ref)) < 1e-6, "mismatch vs reference"

    # Also exercise the padded (size not a multiple of 128) path once.
    x_odd = jax.random.normal(jax.random.PRNGKey(1), (3, 5, 7), jnp.float32)
    out_odd = jax.block_until_ready(scale_forward(x_odd, scale))
    assert out_odd.shape == x_odd.shape
    assert jnp.max(jnp.abs(out_odd - x_odd * scale[0])) < 1e-6, "mismatch (padded path)"

    print("KERNEL_OK")
</pallas_src>

<mosaic_0001>
module attributes {stable_mosaic.version = 11 : i64} {
  func.func @_scale_kernel(%arg0: i32, %arg1: memref<1xf32, #tpu.memory_space<smem>>, %arg2: memref<16x128xf32, #tpu.memory_space<vmem>>, %arg3: memref<16x128xf32, #tpu.memory_space<vmem>>) attributes {dimension_semantics = [#tpu.dimension_semantics<parallel>], iteration_bounds = array<i64: 1>, scalar_prefetch = 0 : i64, scratch_operands = 0 : i64, tpu.core_type = #tpu.core_type<tc>, window_params = [{transform_indices = @transform_0, window_bounds = array<i64: 1>}, {transform_indices = @transform_1, window_bounds = array<i64: 16, 128>}, {transform_indices = @transform_2, window_bounds = array<i64: 16, 128>}]} {
    %c0 = arith.constant 0 : index
    %c0_0 = arith.constant 0 : index
    %0 = vector.load %arg2[%c0, %c0_0] : memref<16x128xf32, #tpu.memory_space<vmem>>, vector<16x128xf32>
    %c0_1 = arith.constant 0 : index
    %1 = memref.load %arg1[%c0_1] : memref<1xf32, #tpu.memory_space<smem>>
    %2 = vector.broadcast %1 : f32 to vector<16x128xf32>
    %3 = arith.mulf %0, %2 : vector<16x128xf32>
    %c0_2 = arith.constant 0 : index
    %c0_3 = arith.constant 0 : index
    %4 = vector.load %arg3[%c0_2, %c0_3] : memref<16x128xf32, #tpu.memory_space<vmem>>, vector<16x128xf32>
    tpu.vector_store %arg3[%c0_2, %c0_3], %3 {strides = array<i32>} : memref<16x128xf32, #tpu.memory_space<vmem>>, vector<16x128xf32>,
    return
  }
  func.func @transform_0(%arg0: i32) -> i32 {
    %c0_i32 = arith.constant 0 : i32
    %c0_i32_0 = arith.constant 0 : i32
    return %c0_i32 : i32
  }
  func.func @transform_1(%arg0: i32) -> (i32, i32) {
    %c0_i32 = arith.constant 0 : i32
    %c0_i32_0 = arith.constant 0 : i32
    return %arg0, %c0_i32 : i32, i32
  }
  func.func @transform_2(%arg0: i32) -> (i32, i32) {
    %c0_i32 = arith.constant 0 : i32
    %c0_i32_0 = arith.constant 0 : i32
    return %arg0, %c0_i32 : i32, i32
  }
}

</mosaic_0001>

<llo_original>
// kernel: scale_forward.1
$region0: #{scale_forward.1}
  #allocation0 [shape = 'u32[]', space=smem, size = 0x4, offset = 0x4, fixed_abs, tag = 'smem constant byte address 0x4 - core index']
  #allocation1 [shape = 'u32[144,128]{1,0:T(1,128)}', space=vmem, size = 0x12000, scoped, tag = 'internal scratch']
  #allocation2 [shape = 'f32[1]{0:T(128)S(6)}', space=smem, size = 0x200, scoped, tag = 'scoped memory for scale_forward.1']
  %s0 = inlined_call_operand.<no memory space> [shape: f32[1], index: 0, kind: input, shape index: {}]
  %s1 = inlined_call_operand.vmem [shape: f32[16,128], index: 1, kind: input, shape index: {}]
  %s2 = inlined_call_operand.vmem [shape: f32[16,128], index: 2, kind: output, shape index: {}]
  %s3 = sld [smem:[#allocation0]]
  $region18: #{scale_forward.1} parent=0
    _
  %s5 = ssub.s32 1, %s3
  %s6 = scalar_select 0, %s5, %s3
  %7 = sst [smem:[#allocation2]] %s0
  // Predicated region
  $region2: #{scale_forward.1} parent=0 // pred_check
    _
  $region3: #{scale_forward.1} parent=0 // pred_check_branch
    %9 = sbr.rel (0) target = $region5
  $region4: #{scale_forward.1} parent=0 // pred_region
    _
  $region5: #{scale_forward.1} parent=0 // pred_fallthru
    _
  // Predicated region
  $region6: #{scale_forward.1} parent=0 // pred_check
    _
  $region7: #{scale_forward.1} parent=0 // pred_check_branch
    %11 = sbr.rel (0) target = $region9
  $region8: #{scale_forward.1} parent=0 // pred_region
    _
  $region9: #{scale_forward.1} parent=0 // pred_fallthru
    _
  %v12 = vld [vmem:[%s1] sm:$0xff]
  %v13 = vld [vmem:[%s1 + $0x8] sm:$0xff]
  %s14 = sld [smem:[#allocation2]]
  %v15 = vstv %s14
  %v16 = vmul.f32 %v12, %v15
  %v17 = vmul.f32 %v13, %v15
  %18 = vst [vmem:[%s2] sm:$0xff] %v16
  %19 = vst [vmem:[%s2 + $0x8] sm:$0xff] %v17
  // Predicated region
  $region10: #{scale_forward.1} parent=0 // pred_check
    _
  $region11: #{scale_forward.1} parent=0 // pred_check_branch
    %21 = sbr.rel (0) target = $region13
  $region12: #{scale_forward.1} parent=0 // pred_region
    _
  $region13: #{scale_forward.1} parent=0 // pred_fallthru
    _
  // Predicated region
  $region14: #{scale_forward.1} parent=0 // pred_check
    _
  $region15: #{scale_forward.1} parent=0 // pred_check_branch
    %23 = sbr.rel (0) target = $region17
  $region16: #{scale_forward.1} parent=0 // pred_region
    _
  $region17: #{scale_forward.1} parent=0 // pred_fallthru
    _

</llo_original>
